<compile_context>
chip_gen: v5e
topology: v5e:2x2
jax: 0.10.0
libtpu: 0.0.40
codegen_flags: <defaults>
</compile_context>

<pallas_src>
import jax
import jax.numpy as jnp
from jax import lax
from jax.experimental import pallas as pl
from jax.experimental.pallas import tpu as pltpu


def _make_kernel(B, H, WCi, WCo):
    """Kernel over a batch tile of B images, rows lane-packed as (B, H, W*C)."""
    BH = B * H

    def kernel(x_ref, g1_ref, beff_ref, g2_ref, bout_ref, o_ref):
        x = x_ref[...]                       # (B, H, W*Cin), compute dtype
        cdt = x.dtype

        def conv_rows(rows_pad, g_ref, bias_row):
            # rows_pad: (B, H+2, K) zero-padded along H (registers)
            # g_ref   : (3, K, WCo) banded conv matrix
            acc = jnp.zeros((BH, WCo), jnp.float32)
            for ky in range(3):
                lhs = rows_pad[:, ky:ky + H, :].reshape(BH, rows_pad.shape[-1])
                acc = acc + jnp.dot(lhs, g_ref[ky],
                                    preferred_element_type=jnp.float32)
            return acc + bias_row            # bias_row: (1, WCo), broadcasts

        # -- fused expand_1 + expand_3 + squeeze (one effective 3x3 conv) + ReLU
        zx = jnp.zeros((B, 1, WCi), cdt)
        xp = jnp.concatenate([zx, x, zx], axis=1)            # (B, H+2, WCi)
        s = jnp.maximum(conv_rows(xp, g1_ref, beff_ref[...]), 0.0)   # (BH, WCo)

        # -- outconv (3x3, pad=1) + ReLU; intermediate stays in registers
        zs = jnp.zeros((B, 1, WCo), cdt)
        sp = jnp.concatenate([zs, s.reshape(B, H, WCo).astype(cdt), zs], axis=1)
        out = jnp.maximum(conv_rows(sp, g2_ref, bout_ref[...]), 0.0)

        o_ref[...] = out.reshape(B, H, WCo).astype(o_ref.dtype)

    return kernel


def _band_matrices(w_hwio, W):
    """(3, 3, Ci, Co) 3x3 conv weights -> (3, W*Ci, W*Co) banded row-matmul mats.

    G[ky][(w_in, ci), (w_out, co)] = w[ky, w_in - w_out + 1, ci, co] if the
    tap is in range, else 0.  Horizontal padding is implicit (rows outside
    [0, W) simply do not exist).  Built with gather+mask (exact, no matmul).
    """
    _, _, Ci, Co = w_hwio.shape
    wi = jnp.arange(W)[:, None]            # w_in
    wo = jnp.arange(W)[None, :]            # w_out
    kx = wi - wo + 1                       # horizontal tap feeding w_in -> w_out
    valid = (kx >= 0) & (kx <= 2)
    g = w_hwio[:, jnp.clip(kx, 0, 2)]      # (3, W, W, Ci, Co)
    g = jnp.where(valid[None, :, :, None, None], g, 0.0)
    g = jnp.transpose(g, (0, 1, 3, 2, 4))  # (3, W_in, Ci, W_out, Co)
    return g.reshape(3, W * Ci, W * Co)


def unsqueeze_block(x_nchw, w1, b1, w3, b3, wsq, bsq, wout, bout,
                    compute_dtype=jnp.float32):
    """x_nchw: (N, Cin, H, W).  Weights channel-last / HWIO.  Returns NCHW."""
    N, Cin, H, W = x_nchw.shape
    M1 = w1.shape[-1]
    Mid, Cout = wsq.shape

    hi = lax.Precision.HIGHEST
    wsq1, wsq3 = wsq[:M1], wsq[M1:]

    # Fold expand_1 / expand_3 / squeeze into one effective 3x3 conv.
    w_eff = jnp.einsum('yxim,mo->yxio', w3, wsq3, precision=hi)   # (3,3,Cin,Cout)
    w_eff = w_eff.at[1, 1].add(jnp.dot(w1, wsq1, precision=hi))
    b_eff = (jnp.dot(b1, wsq1, precision=hi)
             + jnp.dot(b3, wsq3, precision=hi) + bsq)             # (Cout,)

    WCi, WCo = W * Cin, W * Cout
    g1 = _band_matrices(w_eff, W)                 # (3, WCi, WCo)
    g2 = _band_matrices(wout, W)                  # (3, WCo, WCo)
    beff_row = jnp.tile(b_eff, W).reshape(1, WCo).astype(jnp.float32)
    bout_row = jnp.tile(bout, W).reshape(1, WCo).astype(jnp.float32)

    # Lane-packed NHWC rows: last dim W*C is the dense lane dim.
    x_rows = jnp.transpose(x_nchw, (0, 2, 3, 1)).reshape(N, H, WCi)

    x_rows = x_rows.astype(compute_dtype)
    g1 = g1.astype(compute_dtype)
    g2 = g2.astype(compute_dtype)

    # Batch several images per grid step (largest divisor of N that is <= 8).
    B_tile = max(d for d in range(1, min(N, 8) + 1) if N % d == 0)

    kernel = _make_kernel(B_tile, H, WCi, WCo)

    # TODO(synk): for large H/W/C, tile H with a 1-row halo and set
    # vmem_limit_bytes (v7x has 64 MiB VMEM); full-image blocks are fine here.
    out_rows = pl.pallas_call(
        kernel,
        out_shape=jax.ShapeDtypeStruct((N, H, WCo), x_nchw.dtype),
        grid_spec=pltpu.PrefetchScalarGridSpec(
            num_scalar_prefetch=0,
            grid=(N // B_tile,),
            in_specs=[
                pl.BlockSpec((B_tile, H, WCi), lambda n: (n, 0, 0)),
                pl.BlockSpec((3, WCi, WCo), lambda n: (0, 0, 0)),
                pl.BlockSpec((1, WCo), lambda n: (0, 0)),
                pl.BlockSpec((3, WCo, WCo), lambda n: (0, 0, 0)),
                pl.BlockSpec((1, WCo), lambda n: (0, 0)),
            ],
            out_specs=pl.BlockSpec((B_tile, H, WCo), lambda n: (n, 0, 0)),
        ),
        compiler_params=pltpu.CompilerParams(
            dimension_semantics=("parallel",)),   # v7x: shard batch over 2 TCs
    )(x_rows, g1, beff_row, g2, bout_row)

    # (N, H, W*Cout) -> NCHW to match the PyTorch module's output convention.
    return jnp.transpose(out_rows.reshape(N, H, W, Cout), (0, 3, 1, 2))


# ---------------- pure-JAX reference (for self-check) ----------------
def _conv_ref(x_nhwc, w_hwio, b, pad):
    y = lax.conv_general_dilated(
        x_nhwc, w_hwio, window_strides=(1, 1),
        padding=[(pad, pad), (pad, pad)],
        dimension_numbers=("NHWC", "HWIO", "NHWC"),
        precision=lax.Precision.HIGHEST)
    return y + b


def unsqueeze_block_ref(x_nchw, w1, b1, w3, b3, wsq, bsq, wout, bout):
    x = jnp.transpose(x_nchw, (0, 2, 3, 1))
    Cin, M1 = w1.shape
    x1 = _conv_ref(x, w1.reshape(1, 1, Cin, M1), b1, 0)
    x3 = _conv_ref(x, w3, b3, 1)
    xmid = jnp.concatenate([x1, x3], axis=-1)
    Mid, Cout = wsq.shape
    s = jax.nn.relu(_conv_ref(xmid, wsq.reshape(1, 1, Mid, Cout), bsq, 0))
    o = jax.nn.relu(_conv_ref(s, wout, bout, 1))
    return jnp.transpose(o, (0, 3, 1, 2))


if __name__ == "__main__":
    key = jax.random.PRNGKey(0)
    ks = jax.random.split(key, 9)

    # Small shapes consistent with the module: N=2, Cin=4, H=W=16,
    # mid_channels_1=4, mid_channels=8 (so expand_3 makes 4), out_channels=8.
    N, Cin, H, W = 2, 4, 16, 16
    M1, Mid, Cout = 4, 8, 8
    M3 = Mid - M1

    x = jax.random.normal(ks[0], (N, Cin, H, W), jnp.float32)

    # Deterministic synthetic parameters (HWIO / channel-last layout).
    w1 = jax.random.normal(ks[1], (Cin, M1), jnp.float32) * 0.3
    b1 = jax.random.normal(ks[2], (M1,), jnp.float32) * 0.1
    w3 = jax.random.normal(ks[3], (3, 3, Cin, M3), jnp.float32) * 0.2
    b3 = jax.random.normal(ks[4], (M3,), jnp.float32) * 0.1
    wsq = jax.random.normal(ks[5], (Mid, Cout), jnp.float32) * 0.3
    bsq = jax.random.normal(ks[6], (Cout,), jnp.float32) * 0.1
    wout = jax.random.normal(ks[7], (3, 3, Cout, Cout), jnp.float32) * 0.2
    bout = jax.random.normal(ks[8], (Cout,), jnp.float32) * 0.1

    out = unsqueeze_block(x, w1, b1, w3, b3, wsq, bsq, wout, bout)
    out = jax.block_until_ready(out)

    ref = unsqueeze_block_ref(x, w1, b1, w3, b3, wsq, bsq, wout, bout)
    assert out.shape == (N, Cout, H, W)
    err = float(jnp.max(jnp.abs(out - ref)))
    assert jnp.allclose(out, ref, atol=2e-3, rtol=2e-3), err

    print("KERNEL_OK")
</pallas_src>

<mosaic_0001>
module attributes {stable_mosaic.version = 11 : i64} {
  func.func @kernel(%arg0: i32, %arg1: memref<2x16x64xf32, #tpu.memory_space<vmem>>, %arg2: memref<3x64x128xf32, #tpu.memory_space<vmem>>, %arg3: memref<1x128xf32, #tpu.memory_space<vmem>>, %arg4: memref<3x128x128xf32, #tpu.memory_space<vmem>>, %arg5: memref<1x128xf32, #tpu.memory_space<vmem>>, %arg6: memref<2x16x128xf32, #tpu.memory_space<vmem>>) attributes {dimension_semantics = [#tpu.dimension_semantics<parallel>], iteration_bounds = array<i64: 1>, scalar_prefetch = 0 : i64, scratch_operands = 0 : i64, tpu.core_type = #tpu.core_type<tc>, window_params = [{transform_indices = @transform_0, window_bounds = array<i64: 2, 16, 64>}, {pipeline_mode = #tpu.pipeline_mode<synchronous>, transform_indices = @transform_1, window_bounds = array<i64: 3, 64, 128>}, {pipeline_mode = #tpu.pipeline_mode<synchronous>, transform_indices = @transform_2, window_bounds = array<i64: 1, 128>}, {pipeline_mode = #tpu.pipeline_mode<synchronous>, transform_indices = @transform_3, window_bounds = array<i64: 3, 128, 128>}, {pipeline_mode = #tpu.pipeline_mode<synchronous>, transform_indices = @transform_4, window_bounds = array<i64: 1, 128>}, {transform_indices = @transform_5, window_bounds = array<i64: 2, 16, 128>}]} {
    %c0 = arith.constant 0 : index
    %c0_0 = arith.constant 0 : index
    %c0_1 = arith.constant 0 : index
    %0 = vector.load %arg1[%c0, %c0_0, %c0_1] : memref<2x16x64xf32, #tpu.memory_space<vmem>>, vector<2x16x64xf32>
    %cst = arith.constant 0.000000e+00 : f32
    %1 = vector.broadcast %cst : f32 to vector<2x1x64xf32>
    %2 = tpu.concatenate %1, %0, %1 in 1 : vector<2x1x64xf32>, vector<2x16x64xf32>, vector<2x1x64xf32> -> vector<2x18x64xf32>
    %c0_2 = arith.constant 0 : index
    %c0_3 = arith.constant 0 : index
    %3 = vector.load %arg3[%c0_2, %c0_3] : memref<1x128xf32, #tpu.memory_space<vmem>>, vector<1x128xf32>
    %cst_4 = arith.constant 0.000000e+00 : f32
    %4 = vector.broadcast %cst_4 : f32 to vector<32x128xf32>
    %5 = vector.extract_strided_slice %2 {offsets = [0, 0, 0], sizes = [2, 16, 64], strides = [1, 1, 1]} : vector<2x18x64xf32> to vector<2x16x64xf32>
    %6 = vector.shape_cast %5 : vector<2x16x64xf32> to vector<32x64xf32>
    %c0_5 = arith.constant 0 : index
    %c0_6 = arith.constant 0 : index
    %c0_7 = arith.constant 0 : index
    %7 = vector.load %arg2[%c0_5, %c0_6, %c0_7] : memref<3x64x128xf32, #tpu.memory_space<vmem>>, vector<1x64x128xf32>
    %8 = vector.shape_cast %7 : vector<1x64x128xf32> to vector<64x128xf32>
    %cst_8 = arith.constant dense<0.000000e+00> : vector<32x128xf32>
    %9 = tpu.matmul %6, %8, %cst_8 {dimension_numbers = #tpu.dot_dimension_numbers<[1], [0], [0], [1], [0, 0, 1, 1], [], []>} : vector<32x64xf32>, vector<64x128xf32>, vector<32x128xf32> -> vector<32x128xf32>
    %10 = arith.addf %4, %9 : vector<32x128xf32>
    %11 = vector.extract_strided_slice %2 {offsets = [0, 1, 0], sizes = [2, 16, 64], strides = [1, 1, 1]} : vector<2x18x64xf32> to vector<2x16x64xf32>
    %12 = vector.shape_cast %11 : vector<2x16x64xf32> to vector<32x64xf32>
    %c1 = arith.constant 1 : index
    %c0_9 = arith.constant 0 : index
    %c0_10 = arith.constant 0 : index
    %13 = vector.load %arg2[%c1, %c0_9, %c0_10] : memref<3x64x128xf32, #tpu.memory_space<vmem>>, vector<1x64x128xf32>
    %14 = vector.shape_cast %13 : vector<1x64x128xf32> to vector<64x128xf32>
    %cst_11 = arith.constant dense<0.000000e+00> : vector<32x128xf32>
    %15 = tpu.matmul %12, %14, %cst_11 {dimension_numbers = #tpu.dot_dimension_numbers<[1], [0], [0], [1], [0, 0, 1, 1], [], []>} : vector<32x64xf32>, vector<64x128xf32>, vector<32x128xf32> -> vector<32x128xf32>
    %16 = arith.addf %10, %15 : vector<32x128xf32>
    %17 = vector.extract_strided_slice %2 {offsets = [0, 2, 0], sizes = [2, 16, 64], strides = [1, 1, 1]} : vector<2x18x64xf32> to vector<2x16x64xf32>
    %18 = vector.shape_cast %17 : vector<2x16x64xf32> to vector<32x64xf32>
    %c2 = arith.constant 2 : index
    %c0_12 = arith.constant 0 : index
    %c0_13 = arith.constant 0 : index
    %19 = vector.load %arg2[%c2, %c0_12, %c0_13] : memref<3x64x128xf32, #tpu.memory_space<vmem>>, vector<1x64x128xf32>
    %20 = vector.shape_cast %19 : vector<1x64x128xf32> to vector<64x128xf32>
    %cst_14 = arith.constant dense<0.000000e+00> : vector<32x128xf32>
    %21 = tpu.matmul %18, %20, %cst_14 {dimension_numbers = #tpu.dot_dimension_numbers<[1], [0], [0], [1], [0, 0, 1, 1], [], []>} : vector<32x64xf32>, vector<64x128xf32>, vector<32x128xf32> -> vector<32x128xf32>
    %22 = arith.addf %16, %21 : vector<32x128xf32>
    %23 = vector.broadcast %3 : vector<1x128xf32> to vector<32x128xf32>
    %24 = arith.addf %22, %23 : vector<32x128xf32>
    %cst_15 = arith.constant 0.000000e+00 : f32
    %25 = vector.broadcast %cst_15 : f32 to vector<32x128xf32>
    %26 = arith.maximumf %24, %25 : vector<32x128xf32>
    %cst_16 = arith.constant 0.000000e+00 : f32
    %27 = vector.broadcast %cst_16 : f32 to vector<2x1x128xf32>
    %28 = vector.shape_cast %26 : vector<32x128xf32> to vector<2x16x128xf32>
    %29 = tpu.concatenate %27, %28, %27 in 1 : vector<2x1x128xf32>, vector<2x16x128xf32>, vector<2x1x128xf32> -> vector<2x18x128xf32>
    %c0_17 = arith.constant 0 : index
    %c0_18 = arith.constant 0 : index
    %30 = vector.load %arg5[%c0_17, %c0_18] : memref<1x128xf32, #tpu.memory_space<vmem>>, vector<1x128xf32>
    %cst_19 = arith.constant 0.000000e+00 : f32
    %31 = vector.broadcast %cst_19 : f32 to vector<32x128xf32>
    %32 = vector.extract_strided_slice %29 {offsets = [0, 0, 0], sizes = [2, 16, 128], strides = [1, 1, 1]} : vector<2x18x128xf32> to vector<2x16x128xf32>
    %33 = vector.shape_cast %32 : vector<2x16x128xf32> to vector<32x128xf32>
    %c0_20 = arith.constant 0 : index
    %c0_21 = arith.constant 0 : index
    %c0_22 = arith.constant 0 : index
    %34 = vector.load %arg4[%c0_20, %c0_21, %c0_22] : memref<3x128x128xf32, #tpu.memory_space<vmem>>, vector<1x128x128xf32>
    %35 = vector.shape_cast %34 : vector<1x128x128xf32> to vector<128x128xf32>
    %cst_23 = arith.constant dense<0.000000e+00> : vector<32x128xf32>
    %36 = tpu.matmul %33, %35, %cst_23 {dimension_numbers = #tpu.dot_dimension_numbers<[1], [0], [0], [1], [0, 0, 1, 1], [], []>} : vector<32x128xf32>, vector<128x128xf32>, vector<32x128xf32> -> vector<32x128xf32>
    %37 = arith.addf %31, %36 : vector<32x128xf32>
    %38 = vector.extract_strided_slice %29 {offsets = [0, 1, 0], sizes = [2, 16, 128], strides = [1, 1, 1]} : vector<2x18x128xf32> to vector<2x16x128xf32>
    %39 = vector.shape_cast %38 : vector<2x16x128xf32> to vector<32x128xf32>
    %c1_24 = arith.constant 1 : index
    %c0_25 = arith.constant 0 : index
    %c0_26 = arith.constant 0 : index
    %40 = vector.load %arg4[%c1_24, %c0_25, %c0_26] : memref<3x128x128xf32, #tpu.memory_space<vmem>>, vector<1x128x128xf32>
    %41 = vector.shape_cast %40 : vector<1x128x128xf32> to vector<128x128xf32>
    %cst_27 = arith.constant dense<0.000000e+00> : vector<32x128xf32>
    %42 = tpu.matmul %39, %41, %cst_27 {dimension_numbers = #tpu.dot_dimension_numbers<[1], [0], [0], [1], [0, 0, 1, 1], [], []>} : vector<32x128xf32>, vector<128x128xf32>, vector<32x128xf32> -> vector<32x128xf32>
    %43 = arith.addf %37, %42 : vector<32x128xf32>
    %44 = vector.extract_strided_slice %29 {offsets = [0, 2, 0], sizes = [2, 16, 128], strides = [1, 1, 1]} : vector<2x18x128xf32> to vector<2x16x128xf32>
    %45 = vector.shape_cast %44 : vector<2x16x128xf32> to vector<32x128xf32>
    %c2_28 = arith.constant 2 : index
    %c0_29 = arith.constant 0 : index
    %c0_30 = arith.constant 0 : index
    %46 = vector.load %arg4[%c2_28, %c0_29, %c0_30] : memref<3x128x128xf32, #tpu.memory_space<vmem>>, vector<1x128x128xf32>
    %47 = vector.shape_cast %46 : vector<1x128x128xf32> to vector<128x128xf32>
    %cst_31 = arith.constant dense<0.000000e+00> : vector<32x128xf32>
    %48 = tpu.matmul %45, %47, %cst_31 {dimension_numbers = #tpu.dot_dimension_numbers<[1], [0], [0], [1], [0, 0, 1, 1], [], []>} : vector<32x128xf32>, vector<128x128xf32>, vector<32x128xf32> -> vector<32x128xf32>
    %49 = arith.addf %43, %48 : vector<32x128xf32>
    %50 = vector.broadcast %30 : vector<1x128xf32> to vector<32x128xf32>
    %51 = arith.addf %49, %50 : vector<32x128xf32>
    %cst_32 = arith.constant 0.000000e+00 : f32
    %52 = vector.broadcast %cst_32 : f32 to vector<32x128xf32>
    %53 = arith.maximumf %51, %52 : vector<32x128xf32>
    %54 = vector.shape_cast %53 : vector<32x128xf32> to vector<2x16x128xf32>
    %c0_33 = arith.constant 0 : index
    %c0_34 = arith.constant 0 : index
    %c0_35 = arith.constant 0 : index
    %55 = vector.load %arg6[%c0_33, %c0_34, %c0_35] : memref<2x16x128xf32, #tpu.memory_space<vmem>>, vector<2x16x128xf32>
    tpu.vector_store %arg6[%c0_33, %c0_34, %c0_35], %54 {strides = array<i32>} : memref<2x16x128xf32, #tpu.memory_space<vmem>>, vector<2x16x128xf32>,
    return
  }
  func.func @transform_0(%arg0: i32) -> (i32, i32, i32) {
    %c0_i32 = arith.constant 0 : i32
    %c0_i32_0 = arith.constant 0 : i32
    %c0_i32_1 = arith.constant 0 : i32
    return %arg0, %c0_i32, %c0_i32_0 : i32, i32, i32
  }
  func.func @transform_1(%arg0: i32) -> (i32, i32, i32) {
    %c0_i32 = arith.constant 0 : i32
    %c0_i32_0 = arith.constant 0 : i32
    %c0_i32_1 = arith.constant 0 : i32
    %c0_i32_2 = arith.constant 0 : i32
    return %c0_i32, %c0_i32_0, %c0_i32_1 : i32, i32, i32
  }
  func.func @transform_2(%arg0: i32) -> (i32, i32) {
    %c0_i32 = arith.constant 0 : i32
    %c0_i32_0 = arith.constant 0 : i32
    %c0_i32_1 = arith.constant 0 : i32
    return %c0_i32, %c0_i32_0 : i32, i32
  }
  func.func @transform_3(%arg0: i32) -> (i32, i32, i32) {
    %c0_i32 = arith.constant 0 : i32
    %c0_i32_0 = arith.constant 0 : i32
    %c0_i32_1 = arith.constant 0 : i32
    %c0_i32_2 = arith.constant 0 : i32
    return %c0_i32, %c0_i32_0, %c0_i32_1 : i32, i32, i32
  }
  func.func @transform_4(%arg0: i32) -> (i32, i32) {
    %c0_i32 = arith.constant 0 : i32
    %c0_i32_0 = arith.constant 0 : i32
    %c0_i32_1 = arith.constant 0 : i32
    return %c0_i32, %c0_i32_0 : i32, i32
  }
  func.func @transform_5(%arg0: i32) -> (i32, i32, i32) {
    %c0_i32 = arith.constant 0 : i32
    %c0_i32_0 = arith.constant 0 : i32
    %c0_i32_1 = arith.constant 0 : i32
    return %arg0, %c0_i32, %c0_i32_0 : i32, i32, i32
  }
}

</mosaic_0001>

<llo_original>
// kernel: tpu_custom_call.1
$region0: #{tpu_custom_call.1}
  #allocation0 [shape = 'u32[]', space=smem, size = 0x4, offset = 0x4, fixed_abs, tag = 'smem constant byte address 0x4 - core index']
  #allocation1 [shape = 'u32[72,128]{1,0:T(1,128)}', space=vmem, size = 0x9000, scoped, tag = 'internal scratch']
  %s0 = inlined_call_operand.hbm [shape: f32[2,16,64], index: 0, kind: input, shape index: {}]
  %s1 = inlined_call_operand.hbm [shape: f32[3,64,128], index: 1, kind: input, shape index: {}]
  %s2 = inlined_call_operand.vmem [shape: f32[1,128], index: 2, kind: input, shape index: {}]
  %s3 = inlined_call_operand.hbm [shape: f32[3,128,128], index: 3, kind: input, shape index: {}]
  %s4 = inlined_call_operand.vmem [shape: f32[1,128], index: 4, kind: input, shape index: {}]
  %s5 = inlined_call_operand.hbm [shape: f32[2,16,128], index: 5, kind: output, shape index: {}]
  %s6 = sld [smem:[#allocation0]]
  $region42: #{tpu_custom_call.1} parent=0
    _
  %s8 = ssub.s32 1, %s6
  %s9 = scalar_select 0, %s8, %s6
  $region1: #{tpu_custom_call.1} parent=0
    #allocation2 [shape = 'u8[16384]{0}', space=vmem, size = 0x4000, scoped, tag = 'input window, operand 0, single buffered']
    #allocation3 [shape = 's32[1]{0}', space=sflag, size = 0x4, scoped, tag = 'scoped memory for tpu_custom_call.1']
    #allocation4 [shape = 's32[1]{0}', space=sflag, size = 0x4, scoped, tag = 'scoped memory for tpu_custom_call.1']
    #allocation5 [shape = 'u8[98304]{0}', space=vmem, size = 0x18000, scoped, tag = 'input window, operand 1, single buffered']
    #allocation6 [shape = 's32[1]{0}', space=sflag, size = 0x4, scoped, tag = 'scoped memory for tpu_custom_call.1']
    #allocation7 [shape = 'u8[196608]{0}', space=vmem, size = 0x30000, scoped, tag = 'input window, operand 3, single buffered']
    #allocation8 [shape = 'u8[16384]{0}', space=vmem, size = 0x4000, scoped, tag = 'output window, operand 0, single buffered']
    %10 = vsyncpa [#allocation3], 0
    %11 = vsyncpa [#allocation6], 0
    %12 = vsyncpa [#allocation4], 0
    // Predicated region
    $region2: #{tpu_custom_call.1} parent=1 // pred_check
      _
    $region3: #{tpu_custom_call.1} parent=1 // pred_check_branch
      %14 = sbr.rel (0) target = $region5
    $region4: #{tpu_custom_call.1} parent=1 // pred_region
      %16 = vsyncadd [#allocation3], 0
      %s17 = sshll.u32 %s0, 4
      %s18 = int_to_ptr.hbm [resolvable:$true] %s17
      %s19 = sshll.u32 [#allocation2], 4
      %s20 = int_to_ptr.vmem [resolvable:$true] %s19
      %25 = dma.hbm_to_vmem [thread:$0]  %s18, 512, %s20, [#allocation3], 128, 128, 8
    $region5: #{tpu_custom_call.1} parent=1 // pred_fallthru
      _
    // Predicated region
    $region6: #{tpu_custom_call.1} parent=1 // pred_check
      _
    $region7: #{tpu_custom_call.1} parent=1 // pred_check_branch
      %27 = sbr.rel (0) target = $region9
    $region8: #{tpu_custom_call.1} parent=1 // pred_region
      %29 = vsyncadd [#allocation6], 0
      %s30 = sshll.u32 %s1, 4
      %s31 = int_to_ptr.hbm [resolvable:$true] %s30
      %s32 = sshll.u32 [#allocation5], 4
      %s33 = int_to_ptr.vmem [resolvable:$true] %s32
      %38 = dma.hbm_to_vmem [thread:$0]  %s31, 3072, %s33, [#allocation6], 128, 128, 8
    $region9: #{tpu_custom_call.1} parent=1 // pred_fallthru
      _
    // Predicated region
    $region10: #{tpu_custom_call.1} parent=1 // pred_check
      _
    $region11: #{tpu_custom_call.1} parent=1 // pred_check_branch
      %40 = sbr.rel (0) target = $region13
    $region12: #{tpu_custom_call.1} parent=1 // pred_region
      _
    $region13: #{tpu_custom_call.1} parent=1 // pred_fallthru
      _
    // Predicated region
    $region14: #{tpu_custom_call.1} parent=1 // pred_check
      _
    $region15: #{tpu_custom_call.1} parent=1 // pred_check_branch
      %42 = sbr.rel (0) target = $region17
    $region16: #{tpu_custom_call.1} parent=1 // pred_region
      %44 = vsyncadd [#allocation6], 0
      %s45 = sshll.u32 %s3, 4
      %s46 = int_to_ptr.hbm [resolvable:$true] %s45
      %s47 = sshll.u32 [#allocation7], 4
      %s48 = int_to_ptr.vmem [resolvable:$true] %s47
      %53 = dma.hbm_to_vmem [thread:$0]  %s46, 6144, %s48, [#allocation6], 128, 128, 8
    $region17: #{tpu_custom_call.1} parent=1 // pred_fallthru
      _
    // Predicated region
    $region18: #{tpu_custom_call.1} parent=1 // pred_check
      _
    $region19: #{tpu_custom_call.1} parent=1 // pred_check_branch
      %55 = sbr.rel (0) target = $region21
    $region20: #{tpu_custom_call.1} parent=1 // pred_region
      _
    $region21: #{tpu_custom_call.1} parent=1 // pred_fallthru
      _
    // Predicated region
    $region22: #{tpu_custom_call.1} parent=1 // pred_check
      _
    $region23: #{tpu_custom_call.1} parent=1 // pred_check_branch
      %57 = sbr.rel (0) target = $region25
    $region24: #{tpu_custom_call.1} parent=1 // pred_region
      %59 = dma.done [#allocation3], 512
    $region25: #{tpu_custom_call.1} parent=1 // pred_fallthru
      _
    // Predicated region
    $region26: #{tpu_custom_call.1} parent=1 // pred_check
      _
    $region27: #{tpu_custom_call.1} parent=1 // pred_check_branch
      %61 = sbr.rel (0) target = $region29
    $region28: #{tpu_custom_call.1} parent=1 // pred_region
      %63 = dma.done [#allocation6], 3072
    $region29: #{tpu_custom_call.1} parent=1 // pred_fallthru
      _
    // Predicated region
    $region30: #{tpu_custom_call.1} parent=1 // pred_check
      _
    $region31: #{tpu_custom_call.1} parent=1 // pred_check_branch
      %65 = sbr.rel (0) target = $region33
    $region32: #{tpu_custom_call.1} parent=1 // pred_region
      %67 = dma.done [#allocation6], 6144
    $region33: #{tpu_custom_call.1} parent=1 // pred_fallthru
      _
    %v68 = vld [vmem:[#allocation2] sm:$0xff]
    %v69 = vld [vmem:[#allocation2 + $0x8] sm:$0xff]
    %v70 = vld [vmem:[#allocation2 + $0x10] sm:$0xff]
    %v71 = vld [vmem:[#allocation2 + $0x18] sm:$0xff]
    %vm76 = vcmask 1040384
    %v77 = vrot.slane %v68, 7
    %v78 = vrot.slane %v69, 7
    %v79 = vsel %vm76, %v77, %v78
    %v80 = vrot.slane %v70, 7
    %v81 = vrot.slane %v71, 7
    %v82 = vsel %vm76, %v80, %v81
    %v87 = vsel %vm76, 0.0, %v77
    %v88 = vsel %vm76, 0.0, %v80
    %v89 = vsel %vm76, %v78, 0.0
    %v90 = vsel %vm76, %v81, 0.0
    %v91 = vld [vmem:[%s2] sm:$0x1]
    %v92 = vld [vmem:[#allocation5] sm:$0xff]
    %v93 = vld [vmem:[#allocation5 + $0x8] sm:$0xff]
    %v94 = vld [vmem:[#allocation5 + $0x10] sm:$0xff]
    %v95 = vld [vmem:[#allocation5 + $0x18] sm:$0xff]
    %v96 = vld [vmem:[#allocation5 + $0x20] sm:$0xff]
    %v97 = vld [vmem:[#allocation5 + $0x28] sm:$0xff]
    %v98 = vld [vmem:[#allocation5 + $0x30] sm:$0xff]
    %v99 = vld [vmem:[#allocation5 + $0x38] sm:$0xff]
    %vm104 = vcmask 1046528
    %v105 = vrot.slane %v87, 1
    %v106 = vrot.slane %v79, 1
    %v107 = vsel %vm104, %v105, %v106
    %v108 = vrot.slane %v89, 1
    %v109 = vsel %vm104, %v106, %v108
    %v110 = vrot.slane %v88, 1
    %v111 = vrot.slane %v82, 1
    %v112 = vsel %vm104, %v110, %v111
    %v113 = vrot.slane %v90, 1
    %v114 = vsel %vm104, %v111, %v113
    %s115 = scalar_lea.vmem [#allocation5], 64
    %v116 = vld [vmem:[%s115] sm:$0xff]
    %v117 = vld [vmem:[%s115 + $0x8] sm:$0xff]
    %v118 = vld [vmem:[%s115 + $0x10] sm:$0xff]
    %v119 = vld [vmem:[%s115 + $0x18] sm:$0xff]
    %v120 = vld [vmem:[%s115 + $0x20] sm:$0xff]
    %v121 = vld [vmem:[%s115 + $0x28] sm:$0xff]
    %v122 = vld [vmem:[%s115 + $0x30] sm:$0xff]
    %v123 = vld [vmem:[%s115 + $0x38] sm:$0xff]
    %vm124 = vcmask 523264
    %v125 = vsel %vm124, %v107, 0
    %v127 = vsel %vm124, %v109, 0
    %v129 = vsel %vm124, %v112, 0
    %v131 = vsel %vm124, %v114, 0
    %133 = vmatpush.msra.mxu0 0.0
    %134 = vmatpush.msra.mxu0 0.0
    %135 = vmatpush.msra.mxu0 0.0
    %136 = vmatpush.msra.mxu0 0.0
    %137 = vmatpush.msra.mxu0 0.0
    %138 = vmatpush.msra.mxu0 0.0
    %139 = vmatpush.msra.mxu0 0.0
    %140 = vmatpush.msra.mxu0 0.0
    %141 = vmatpush.msra.mxu0 %v123
    %142 = vmatpush.msra.mxu0 %v122
    %143 = vmatpush.msra.mxu0 %v121
    %144 = vmatpush.msra.mxu0 %v120
    %145 = vmatpush.msra.mxu0 %v119
    %146 = vmatpush.msra.mxu0 %v118
    %147 = vmatpush.msra.mxu0 %v117
    %148 = vmatpush.msra.mxu0 %v116
    %149 = vmatmul.f32.gmra.mxu0 %v125
    %v150 = vpop.f32.mrf.mxu0
    %v151 = vadd.f32 0.0, %v150
    %152 = vmatmul.f32.gmra.mxu0 %v127
    %v153 = vpop.f32.mrf.mxu0
    %v154 = vadd.f32 0.0, %v153
    %155 = vmatmul.f32.gmra.mxu0 %v129
    %v156 = vpop.f32.mrf.mxu0
    %v157 = vadd.f32 0.0, %v156
    %158 = vmatmul.f32.gmra.mxu0 %v131
    %v159 = vpop.f32.mrf.mxu0
    %v160 = vadd.f32 0.0, %v159
    %161 = vdwg.mxu0
    %v162 = vsel %vm124, %v87, 0
    %v164 = vsel %vm124, %v79, 0
    %v166 = vsel %vm124, %v88, 0
    %v168 = vsel %vm124, %v82, 0
    %170 = vmatpush.msra.mxu0 0.0
    %171 = vmatpush.msra.mxu0 0.0
    %172 = vmatpush.msra.mxu0 0.0
    %173 = vmatpush.msra.mxu0 0.0
    %174 = vmatpush.msra.mxu0 0.0
    %175 = vmatpush.msra.mxu0 0.0
    %176 = vmatpush.msra.mxu0 0.0
    %177 = vmatpush.msra.mxu0 0.0
    %178 = vmatpush.msra.mxu0 %v99
    %179 = vmatpush.msra.mxu0 %v98
    %180 = vmatpush.msra.mxu0 %v97
    %181 = vmatpush.msra.mxu0 %v96
    %182 = vmatpush.msra.mxu0 %v95
    %183 = vmatpush.msra.mxu0 %v94
    %184 = vmatpush.msra.mxu0 %v93
    %185 = vmatpush.msra.mxu0 %v92
    %186 = vmatmul.f32.gmra.mxu0 %v162
    %v187 = vpop.f32.mrf.mxu0
    %v188 = vadd.f32 %v151, %v187
    %189 = vmatmul.f32.gmra.mxu0 %v164
    %v190 = vpop.f32.mrf.mxu0
    %v191 = vadd.f32 %v154, %v190
    %192 = vmatmul.f32.gmra.mxu0 %v166
    %v193 = vpop.f32.mrf.mxu0
    %v194 = vadd.f32 %v157, %v193
    %195 = vmatmul.f32.gmra.mxu0 %v168
    %v196 = vpop.f32.mrf.mxu0
    %v197 = vadd.f32 %v160, %v196
    %198 = vdwg.mxu0
    %vm199 = vcmask 1045504
    %v200 = vrot.slane %v87, 2
    %v201 = vrot.slane %v79, 2
    %v202 = vsel %vm199, %v200, %v201
    %v203 = vrot.slane %v89, 2
    %v204 = vsel %vm199, %v201, %v203
    %v205 = vrot.slane %v88, 2
    %v206 = vrot.slane %v82, 2
    %v207 = vsel %vm199, %v205, %v206
    %v208 = vrot.slane %v90, 2
    %v209 = vsel %vm199, %v206, %v208
    %s210 = scalar_lea.vmem [#allocation5], 128
    %v211 = vld [vmem:[%s210] sm:$0xff]
    %v212 = vld [vmem:[%s210 + $0x8] sm:$0xff]
    %v213 = vld [vmem:[%s210 + $0x10] sm:$0xff]
    %v214 = vld [vmem:[%s210 + $0x18] sm:$0xff]
    %v215 = vld [vmem:[%s210 + $0x20] sm:$0xff]
    %v216 = vld [vmem:[%s210 + $0x28] sm:$0xff]
    %v217 = vld [vmem:[%s210 + $0x30] sm:$0xff]
    %v218 = vld [vmem:[%s210 + $0x38] sm:$0xff]
    %v219 = vsel %vm124, %v202, 0
    %v221 = vsel %vm124, %v204, 0
    %v223 = vsel %vm124, %v207, 0
    %v225 = vsel %vm124, %v209, 0
    %227 = vmatpush.msra.mxu0 0.0
    %228 = vmatpush.msra.mxu0 0.0
    %229 = vmatpush.msra.mxu0 0.0
    %230 = vmatpush.msra.mxu0 0.0
    %231 = vmatpush.msra.mxu0 0.0
    %232 = vmatpush.msra.mxu0 0.0
    %233 = vmatpush.msra.mxu0 0.0
    %234 = vmatpush.msra.mxu0 0.0
    %235 = vmatpush.msra.mxu0 %v218
    %236 = vmatpush.msra.mxu0 %v217
    %237 = vmatpush.msra.mxu0 %v216
    %238 = vmatpush.msra.mxu0 %v215
    %239 = vmatpush.msra.mxu0 %v214
    %240 = vmatpush.msra.mxu0 %v213
    %241 = vmatpush.msra.mxu0 %v212
    %242 = vmatpush.msra.mxu0 %v211
    %243 = vmatmul.f32.gmra.mxu0 %v219
    %v244 = vpop.f32.mrf.mxu0
    %v245 = vadd.f32 0.0, %v244
    %246 = vmatmul.f32.gmra.mxu0 %v221
    %v247 = vpop.f32.mrf.mxu0
    %v248 = vadd.f32 0.0, %v247
    %249 = vmatmul.f32.gmra.mxu0 %v223
    %v250 = vpop.f32.mrf.mxu0
    %v251 = vadd.f32 0.0, %v250
    %252 = vmatmul.f32.gmra.mxu0 %v225
    %v253 = vpop.f32.mrf.mxu0
    %v254 = vadd.f32 0.0, %v253
    %255 = vdwg.mxu0
    %v256 = vadd.f32 %v188, %v245
    %v257 = vadd.f32 %v191, %v248
    %v258 = vadd.f32 %v194, %v251
    %v259 = vadd.f32 %v197, %v254
    %v261 = vperm.slane %v91, 0
    %v263 = vadd.f32 %v256, %v261
    %v264 = vadd.f32 %v257, %v261
    %v265 = vadd.f32 %v258, %v261
    %v266 = vadd.f32 %v259, %v261
    %v267 = vmax.f32 %v263, 0.0
    %v268 = vmax.f32 %v264, 0.0
    %v269 = vmax.f32 %v265, 0.0
    %v270 = vmax.f32 %v266, 0.0
    %v275 = vrot.slane %v267, 7
    %v276 = vrot.slane %v268, 7
    %v277 = vsel %vm76, %v275, %v276
    %v278 = vrot.slane %v269, 7
    %v279 = vrot.slane %v270, 7
    %v280 = vsel %vm76, %v278, %v279
    %v287 = vsel %vm76, 0.0, %v275
    %v288 = vsel %vm76, 0.0, %v278
    %v289 = vsel %vm76, %v276, 0.0
    %v290 = vsel %vm76, %v279, 0.0
    %v291 = vld [vmem:[%s4] sm:$0x1]
    %v292 = vld [vmem:[#allocation7] sm:$0xff]
    %v293 = vld [vmem:[#allocation7 + $0x8] sm:$0xff]
    %v294 = vld [vmem:[#allocation7 + $0x10] sm:$0xff]
    %v295 = vld [vmem:[#allocation7 + $0x18] sm:$0xff]
    %v296 = vld [vmem:[#allocation7 + $0x20] sm:$0xff]
    %v297 = vld [vmem:[#allocation7 + $0x28] sm:$0xff]
    %v298 = vld [vmem:[#allocation7 + $0x30] sm:$0xff]
    %v299 = vld [vmem:[#allocation7 + $0x38] sm:$0xff]
    %v300 = vld [vmem:[#allocation7 + $0x40] sm:$0xff]
    %v301 = vld [vmem:[#allocation7 + $0x48] sm:$0xff]
    %v302 = vld [vmem:[#allocation7 + $0x50] sm:$0xff]
    %v303 = vld [vmem:[#allocation7 + $0x58] sm:$0xff]
    %v304 = vld [vmem:[#allocation7 + $0x60] sm:$0xff]
    %v305 = vld [vmem:[#allocation7 + $0x68] sm:$0xff]
    %v306 = vld [vmem:[#allocation7 + $0x70] sm:$0xff]
    %v307 = vld [vmem:[#allocation7 + $0x78] sm:$0xff]
    %v312 = vrot.slane %v287, 1
    %v313 = vrot.slane %v277, 1
    %v314 = vsel %vm104, %v312, %v313
    %v315 = vrot.slane %v289, 1
    %v316 = vsel %vm104, %v313, %v315
    %v317 = vrot.slane %v288, 1
    %v318 = vrot.slane %v280, 1
    %v319 = vsel %vm104, %v317, %v318
    %v320 = vrot.slane %v290, 1
    %v321 = vsel %vm104, %v318, %v320
    %s326 = scalar_lea.vmem [#allocation7], 128
    %v327 = vld [vmem:[%s326] sm:$0xff]
    %v328 = vld [vmem:[%s326 + $0x8] sm:$0xff]
    %v329 = vld [vmem:[%s326 + $0x10] sm:$0xff]
    %v330 = vld [vmem:[%s326 + $0x18] sm:$0xff]
    %v331 = vld [vmem:[%s326 + $0x20] sm:$0xff]
    %v332 = vld [vmem:[%s326 + $0x28] sm:$0xff]
    %v333 = vld [vmem:[%s326 + $0x30] sm:$0xff]
    %v334 = vld [vmem:[%s326 + $0x38] sm:$0xff]
    %v335 = vld [vmem:[%s326 + $0x40] sm:$0xff]
    %v336 = vld [vmem:[%s326 + $0x48] sm:$0xff]
    %v337 = vld [vmem:[%s326 + $0x50] sm:$0xff]
    %v338 = vld [vmem:[%s326 + $0x58] sm:$0xff]
    %v339 = vld [vmem:[%s326 + $0x60] sm:$0xff]
    %v340 = vld [vmem:[%s326 + $0x68] sm:$0xff]
    %v341 = vld [vmem:[%s326 + $0x70] sm:$0xff]
    %v342 = vld [vmem:[%s326 + $0x78] sm:$0xff]
    %343 = vmatpush.msra.mxu0 %v342
    %344 = vmatpush.msra.mxu0 %v341
    %345 = vmatpush.msra.mxu0 %v340
    %346 = vmatpush.msra.mxu0 %v339
    %347 = vmatpush.msra.mxu0 %v338
    %348 = vmatpush.msra.mxu0 %v337
    %349 = vmatpush.msra.mxu0 %v336
    %350 = vmatpush.msra.mxu0 %v335
    %351 = vmatpush.msra.mxu0 %v334
    %352 = vmatpush.msra.mxu0 %v333
    %353 = vmatpush.msra.mxu0 %v332
    %354 = vmatpush.msra.mxu0 %v331
    %355 = vmatpush.msra.mxu0 %v330
    %356 = vmatpush.msra.mxu0 %v329
    %357 = vmatpush.msra.mxu0 %v328
    %358 = vmatpush.msra.mxu0 %v327
    %359 = vmatmul.f32.gmra.mxu0 %v314
    %v360 = vpop.f32.mrf.mxu0
    %v361 = vadd.f32 0.0, %v360
    %362 = vmatmul.f32.gmra.mxu0 %v316
    %v363 = vpop.f32.mrf.mxu0
    %v364 = vadd.f32 0.0, %v363
    %365 = vmatmul.f32.gmra.mxu0 %v319
    %v366 = vpop.f32.mrf.mxu0
    %v367 = vadd.f32 0.0, %v366
    %368 = vmatmul.f32.gmra.mxu0 %v321
    %v369 = vpop.f32.mrf.mxu0
    %v370 = vadd.f32 0.0, %v369
    %371 = vdwg.mxu0
    %372 = vmatpush.msra.mxu0 %v307
    %373 = vmatpush.msra.mxu0 %v306
    %374 = vmatpush.msra.mxu0 %v305
    %375 = vmatpush.msra.mxu0 %v304
    %376 = vmatpush.msra.mxu0 %v303
    %377 = vmatpush.msra.mxu0 %v302
    %378 = vmatpush.msra.mxu0 %v301
    %379 = vmatpush.msra.mxu0 %v300
    %380 = vmatpush.msra.mxu0 %v299
    %381 = vmatpush.msra.mxu0 %v298
    %382 = vmatpush.msra.mxu0 %v297
    %383 = vmatpush.msra.mxu0 %v296
    %384 = vmatpush.msra.mxu0 %v295
    %385 = vmatpush.msra.mxu0 %v294
    %386 = vmatpush.msra.mxu0 %v293
    %387 = vmatpush.msra.mxu0 %v292
    %388 = vmatmul.f32.gmra.mxu0 %v287
    %v389 = vpop.f32.mrf.mxu0
    %v390 = vadd.f32 %v361, %v389
    %391 = vmatmul.f32.gmra.mxu0 %v277
    %v392 = vpop.f32.mrf.mxu0
    %v393 = vadd.f32 %v364, %v392
    %394 = vmatmul.f32.gmra.mxu0 %v288
    %v395 = vpop.f32.mrf.mxu0
    %v396 = vadd.f32 %v367, %v395
    %397 = vmatmul.f32.gmra.mxu0 %v280
    %v398 = vpop.f32.mrf.mxu0
    %v399 = vadd.f32 %v370, %v398
    %400 = vdwg.mxu0
    %v401 = vrot.slane %v287, 2
    %v402 = vrot.slane %v277, 2
    %v403 = vsel %vm199, %v401, %v402
    %v404 = vrot.slane %v289, 2
    %v405 = vsel %vm199, %v402, %v404
    %v406 = vrot.slane %v288, 2
    %v407 = vrot.slane %v280, 2
    %v408 = vsel %vm199, %v406, %v407
    %v409 = vrot.slane %v290, 2
    %v410 = vsel %vm199, %v407, %v409
    %s415 = scalar_lea.vmem [#allocation7], 256
    %v416 = vld [vmem:[%s415] sm:$0xff]
    %v417 = vld [vmem:[%s415 + $0x8] sm:$0xff]
    %v418 = vld [vmem:[%s415 + $0x10] sm:$0xff]
    %v419 = vld [vmem:[%s415 + $0x18] sm:$0xff]
    %v420 = vld [vmem:[%s415 + $0x20] sm:$0xff]
    %v421 = vld [vmem:[%s415 + $0x28] sm:$0xff]
    %v422 = vld [vmem:[%s415 + $0x30] sm:$0xff]
    %v423 = vld [vmem:[%s415 + $0x38] sm:$0xff]
    %v424 = vld [vmem:[%s415 + $0x40] sm:$0xff]
    %v425 = vld [vmem:[%s415 + $0x48] sm:$0xff]
    %v426 = vld [vmem:[%s415 + $0x50] sm:$0xff]
    %v427 = vld [vmem:[%s415 + $0x58] sm:$0xff]
    %v428 = vld [vmem:[%s415 + $0x60] sm:$0xff]
    %v429 = vld [vmem:[%s415 + $0x68] sm:$0xff]
    %v430 = vld [vmem:[%s415 + $0x70] sm:$0xff]
    %v431 = vld [vmem:[%s415 + $0x78] sm:$0xff]
    %432 = vmatpush.msra.mxu0 %v431
    %433 = vmatpush.msra.mxu0 %v430
    %434 = vmatpush.msra.mxu0 %v429
    %435 = vmatpush.msra.mxu0 %v428
    %436 = vmatpush.msra.mxu0 %v427
    %437 = vmatpush.msra.mxu0 %v426
    %438 = vmatpush.msra.mxu0 %v425
    %439 = vmatpush.msra.mxu0 %v424
    %440 = vmatpush.msra.mxu0 %v423
    %441 = vmatpush.msra.mxu0 %v422
    %442 = vmatpush.msra.mxu0 %v421
    %443 = vmatpush.msra.mxu0 %v420
    %444 = vmatpush.msra.mxu0 %v419
    %445 = vmatpush.msra.mxu0 %v418
    %446 = vmatpush.msra.mxu0 %v417
    %447 = vmatpush.msra.mxu0 %v416
    %448 = vmatmul.f32.gmra.mxu0 %v403
    %v449 = vpop.f32.mrf.mxu0
    %v450 = vadd.f32 0.0, %v449
    %451 = vmatmul.f32.gmra.mxu0 %v405
    %v452 = vpop.f32.mrf.mxu0
    %v453 = vadd.f32 0.0, %v452
    %454 = vmatmul.f32.gmra.mxu0 %v408
    %v455 = vpop.f32.mrf.mxu0
    %v456 = vadd.f32 0.0, %v455
    %457 = vmatmul.f32.gmra.mxu0 %v410
    %v458 = vpop.f32.mrf.mxu0
    %v459 = vadd.f32 0.0, %v458
    %460 = vdwg.mxu0
    %v461 = vadd.f32 %v390, %v450
    %v462 = vadd.f32 %v393, %v453
    %v463 = vadd.f32 %v396, %v456
    %v464 = vadd.f32 %v399, %v459
    %v466 = vperm.slane %v291, 0
    %v468 = vadd.f32 %v461, %v466
    %v469 = vadd.f32 %v462, %v466
    %v470 = vadd.f32 %v463, %v466
    %v471 = vadd.f32 %v464, %v466
    %v472 = vmax.f32 %v468, 0.0
    %v473 = vmax.f32 %v469, 0.0
    %v474 = vmax.f32 %v470, 0.0
    %v475 = vmax.f32 %v471, 0.0
    %476 = vst [vmem:[#allocation8] sm:$0xff] %v472
    %477 = vst [vmem:[#allocation8 + $0x8] sm:$0xff] %v473
    %478 = vst [vmem:[#allocation8 + $0x10] sm:$0xff] %v474
    %479 = vst [vmem:[#allocation8 + $0x18] sm:$0xff] %v475
    // Predicated region
    $region34: #{tpu_custom_call.1} parent=1 // pred_check
      _
    $region35: #{tpu_custom_call.1} parent=1 // pred_check_branch
      %481 = sbr.rel (0) target = $region37
    $region36: #{tpu_custom_call.1} parent=1 // pred_region
      %483 = vsyncadd [#allocation4], 0
      %s484 = sshll.u32 [#allocation8], 4
      %s485 = int_to_ptr.vmem [resolvable:$true] %s484
      %s486 = sshll.u32 %s5, 4
      %s487 = int_to_ptr.hbm [resolvable:$true] %s486
      %492 = dma.vmem_to_hbm [thread:$0]  %s485, 512, %s487, [#allocation4], 128, 128, 8
    $region37: #{tpu_custom_call.1} parent=1 // pred_fallthru
      _
    // Predicated region
    $region38: #{tpu_custom_call.1} parent=1 // pred_check
      _
    $region39: #{tpu_custom_call.1} parent=1 // pred_check_branch
      %494 = sbr.rel (0) target = $region41
    $region40: #{tpu_custom_call.1} parent=1 // pred_region
      %496 = dma.done [#allocation4], 512
    $region41: #{tpu_custom_call.1} parent=1 // pred_fallthru
      _
    %497 = vsyncpa [#allocation3], 1
    %498 = vsyncpa [#allocation6], 1
    %499 = vsyncpa [#allocation4], 1

</llo_original>
